<compile_context>
chip_gen: v5e
topology: v5e:2x2
jax: 0.10.0
libtpu: 0.0.40
codegen_flags: <defaults>
</compile_context>

<pallas_src>
import functools

import jax
import jax.numpy as jnp
from jax.experimental import pallas as pl
from jax.experimental.pallas import tpu as pltpu


def _focal_loss_kernel(*refs, gamma, hw, tile_m, tiles_per_split, has_alpha, need_mask):
    """One (C, tile_m) logit tile of one batch element.

    refs = (x_ref, y_ref[, a_ref], out_ref)
      x_ref:   (C, T) logits, native dtype; channels on sublanes, pixels on lanes
      y_ref:   (1, T) integer labels (any <=32-bit int dtype)
      a_ref:   (C, 1) f32 per-class weights (only when has_alpha)
      out_ref: (1, T) f32 per-lane partial sums, resident across the HW-tile axis
    """
    if has_alpha:
        x_ref, y_ref, a_ref, out_ref = refs
    else:
        x_ref, y_ref, out_ref = refs
        a_ref = None

    j = pl.program_id(2)

    @pl.when(j == 0)
    def _():
        out_ref[...] = jnp.zeros_like(out_ref)

    x = x_ref[...]                                   # (C, T) native dtype
    y = y_ref[...].astype(jnp.int32)                 # (1, T)

    cls = jax.lax.broadcasted_iota(jnp.int32, x.shape, 0)          # (C, T)
    hit = cls == y                                                  # (C, T) bool

    # x[target] via select + channel reduce: no f32 one-hot temp, no 0*(-inf) NaN.
    x_y = jnp.sum(jnp.where(hit, x, jnp.zeros((), x.dtype)),
                  axis=0, keepdims=True).astype(jnp.float32)        # (1, T)

    mx = jnp.max(x, axis=0, keepdims=True)                          # (1, T) native dtype
    # Only full-size f32 temporary: exp(x - max) for the logsumexp.
    ex = jnp.exp((x - mx).astype(jnp.float32))                      # (C, T) f32
    lse = jnp.log(jnp.sum(ex, axis=0, keepdims=True))               # (1, T)

    nl = (mx.astype(jnp.float32) + lse) - x_y                       # (1, T)  -log p_target
    pt = jnp.exp(-nl)                                               # always from unweighted nl
    q = 1.0 - pt

    if has_alpha:
        a = a_ref[...].astype(jnp.float32)                          # (C, 1)
        w = jnp.sum(jnp.where(hit, a, 0.0), axis=0, keepdims=True)  # (1, T) alpha[target]
        weighted = w * nl
    else:
        weighted = nl

    focal = (q ** gamma) * weighted                                 # int gamma -> integer_pow

    if need_mask:
        # Lanes past the true pixel count contribute zero.  jnp.where (not *0) so that
        # inf/NaN produced from garbage edge-block data is discarded cleanly.
        s = pl.program_id(1)
        start = (s * tiles_per_split + j) * tile_m
        lane = jax.lax.broadcasted_iota(jnp.int32, (1, tile_m), 1)
        focal = jnp.where(start + lane < hw, focal, 0.0)

    out_ref[...] += focal


def _choose_tile_m(hw, c, itemsize, tile_bytes, vmem_budget=12 << 20):
    """Lane-tile size: ~tile_bytes of logits per grid step, capped by a VMEM estimate
    (2x double-buffered input block + ~4 full-size f32 intermediates); multiple of 128
    unless the full extent hw is used."""
    if hw <= 512:
        return hw
    t = (tile_bytes // (c * itemsize)) // 128 * 128
    per_lane = c * (2 * itemsize + 4 * 4)
    cap = max((vmem_budget // per_lane) // 128 * 128, 128)
    t = min(max(t, 512), cap)
    if t >= hw:
        return hw
    return t


def focal_loss(x_nchw, y_nhw, alpha=None, gamma=3, tile_bytes=2 << 20):
    n, c, h, w = x_nchw.shape
    hw = h * w
    itemsize = x_nchw.dtype.itemsize

    tile_m = _choose_tile_m(hw, c, itemsize, tile_bytes)
    num_m_tiles = pl.cdiv(hw, tile_m)

    # Split the HW-tile range into 2 parallel chunks so both v7x TensorCores have work
    # even when N == 1 (no effect / no harm on single-TC v5e/v6e).
    num_splits = 2 if num_m_tiles >= 2 else 1
    tiles_per_split = pl.cdiv(num_m_tiles, num_splits)

    need_clamp = num_splits * tiles_per_split > num_m_tiles
    need_mask = num_splits * tiles_per_split * tile_m != hw
    last_tile = num_m_tiles - 1

    # NCHW -> (N, C, H*W) / (N, 1, H*W) are free views (no transpose, no extra HBM pass).
    x3 = x_nchw.reshape(n, c, hw)
    if y_nhw.dtype.itemsize > 4:
        y_nhw = y_nhw.astype(jnp.int32)
    y3 = y_nhw.reshape(n, 1, hw)    # keep native (possibly narrow) integer dtype for the DMA

    if need_clamp:
        def tile_idx(s, j):
            return jnp.minimum(s * tiles_per_split + j, last_tile)
    else:
        def tile_idx(s, j):
            return s * tiles_per_split + j

    in_map = lambda i, s, j: (i, 0, tile_idx(s, j))
    in_specs = [
        pl.BlockSpec((None, c, tile_m), in_map),
        pl.BlockSpec((None, 1, tile_m), in_map),
    ]
    inputs = [x3, y3]

    has_alpha = alpha is not None
    if has_alpha:
        a2 = jnp.asarray(alpha, jnp.float32).reshape(c, 1)
        in_specs.append(pl.BlockSpec((c, 1), lambda i, s, j: (0, 0)))
        inputs.append(a2)

    kernel = functools.partial(
        _focal_loss_kernel, gamma=int(gamma), hw=hw, tile_m=tile_m,
        tiles_per_split=tiles_per_split, has_alpha=has_alpha, need_mask=need_mask)

    bytes_accessed = (int(x3.size) * itemsize + int(y3.size) * y3.dtype.itemsize
                      + (c * 4 if has_alpha else 0) + n * num_splits * tile_m * 4)
    cost = pl.CostEstimate(
        flops=int(12 * n * c * hw),
        transcendentals=int((c + 3) * n * hw),
        bytes_accessed=int(bytes_accessed),
    )

    partials = pl.pallas_call(
        kernel,
        out_shape=jax.ShapeDtypeStruct((n, num_splits, 1, tile_m), jnp.float32),
        grid_spec=pltpu.PrefetchScalarGridSpec(
            num_scalar_prefetch=0,
            grid=(n, num_splits, tiles_per_split),
            in_specs=in_specs,
            out_specs=pl.BlockSpec((None, None, 1, tile_m), lambda i, s, j: (i, s, 0, 0)),
        ),
        compiler_params=pltpu.CompilerParams(
            dimension_semantics=("parallel", "parallel", "arbitrary"),
            vmem_limit_bytes=32 * 1024 * 1024,
        ),
        cost_estimate=cost,
    )(*inputs)

    # Final reduction + single multiply by the reciprocal of the true element count.
    return jnp.sum(partials) * (1.0 / (n * hw))


def _focal_loss_ref(x_nchw, y_nhw, alpha=None, gamma=3):
    # pure-JAX reference mirroring the PyTorch module
    logp = jax.nn.log_softmax(x_nchw, axis=1)                         # (N,C,H,W)
    n, c, h, w = x_nchw.shape
    oh = jax.nn.one_hot(y_nhw, c, axis=1, dtype=logp.dtype)           # (N,C,H,W)
    nl = -jnp.sum(oh * logp, axis=1)                                  # (N,H,W)
    pt = jnp.exp(-nl)
    if alpha is None:
        weighted = nl
    else:
        weighted = jnp.asarray(alpha)[y_nhw] * nl
    return jnp.mean((1.0 - pt) ** gamma * weighted)


if __name__ == "__main__":
    key = jax.random.PRNGKey(0)
    k1, k2, k3, k4 = jax.random.split(key, 4)

    # 1) small NCHW batch, no alpha
    N, C, H, W = 2, 4, 16, 16
    x = jax.random.normal(k1, (N, C, H, W), dtype=jnp.float32)
    y = jax.random.randint(k2, (N, H, W), 0, C, dtype=jnp.int32)
    loss = jax.block_until_ready(focal_loss(x, y, alpha=None, gamma=3))
    ref = _focal_loss_ref(x, y, alpha=None, gamma=3)
    assert jnp.allclose(loss, ref, rtol=1e-5, atol=1e-6), (loss, ref)

    # 2) alpha-weighted path
    alpha = jnp.array([0.5, 1.0, 1.5, 2.0], dtype=jnp.float32)
    loss_a = jax.block_until_ready(focal_loss(x, y, alpha=alpha, gamma=3))
    ref_a = _focal_loss_ref(x, y, alpha=alpha, gamma=3)
    assert jnp.allclose(loss_a, ref_a, rtol=1e-5, atol=1e-6), (loss_a, ref_a)

    # 3) non-divisible pixel count with a forced small tile: exercises the cdiv grid,
    #    the in-kernel lane mask, the 2-way HW split and the clamped index_map.
    N2, C2, H2, W2 = 1, 5, 20, 72
    x2 = jax.random.normal(k3, (N2, C2, H2, W2), dtype=jnp.float32)
    y2 = jax.random.randint(k4, (N2, H2, W2), 0, C2, dtype=jnp.int32)
    loss2 = jax.block_until_ready(focal_loss(x2, y2, alpha=None, gamma=2, tile_bytes=8192))
    ref2 = _focal_loss_ref(x2, y2, alpha=None, gamma=2)
    assert jnp.allclose(loss2, ref2, rtol=1e-5, atol=1e-6), (loss2, ref2)

    print("KERNEL_OK")
</pallas_src>

<mosaic_0001>
module attributes {stable_mosaic.version = 11 : i64} {
  func.func @_focal_loss_kernel(%arg0: i32, %arg1: i32, %arg2: i32, %arg3: memref<1x4x256xf32, #tpu.memory_space<vmem>>, %arg4: memref<1x1x256xi32, #tpu.memory_space<vmem>>, %arg5: memref<1x1x1x256xf32, #tpu.memory_space<vmem>>) attributes {dimension_semantics = [#tpu.dimension_semantics<parallel>, #tpu.dimension_semantics<parallel>, #tpu.dimension_semantics<arbitrary>], iteration_bounds = array<i64: 2, 1, 1>, scalar_prefetch = 0 : i64, scratch_operands = 0 : i64, tpu.core_type = #tpu.core_type<tc>, window_params = [{transform_indices = @transform_0, window_bounds = array<i64: 1, 4, 256>}, {transform_indices = @transform_1, window_bounds = array<i64: 1, 1, 256>}, {transform_indices = @transform_2, window_bounds = array<i64: 1, 1, 1, 256>}]} {
    %c0_i32 = arith.constant 0 : i32
    %0 = arith.cmpi eq, %arg2, %c0_i32 : i32
    %1 = arith.extui %0 : i1 to i32
    %c0_i32_0 = arith.constant 0 : i32
    %2 = arith.cmpi ne, %1, %c0_i32_0 : i32
    scf.if %2 {
      %cst_19 = arith.constant 0.000000e+00 : f32
      %38 = vector.broadcast %cst_19 : f32 to vector<1x256xf32>
      %c0_20 = arith.constant 0 : index
      %c0_21 = arith.constant 0 : index
      %c0_22 = arith.constant 0 : index
      %c0_23 = arith.constant 0 : index
      %39 = vector.load %arg5[%c0_20, %c0_21, %c0_22, %c0_23] : memref<1x1x1x256xf32, #tpu.memory_space<vmem>>, vector<1x1x1x256xf32>
      %40 = vector.shape_cast %39 : vector<1x1x1x256xf32> to vector<1x256xf32>
      %41 = vector.shape_cast %38 : vector<1x256xf32> to vector<1x1x1x256xf32>
      tpu.vector_store %arg5[%c0_20, %c0_21, %c0_22, %c0_23], %41 {strides = array<i32>} : memref<1x1x1x256xf32, #tpu.memory_space<vmem>>, vector<1x1x1x256xf32>,
    } else {
    }
    %c0 = arith.constant 0 : index
    %c0_1 = arith.constant 0 : index
    %c0_2 = arith.constant 0 : index
    %3 = vector.load %arg3[%c0, %c0_1, %c0_2] : memref<1x4x256xf32, #tpu.memory_space<vmem>>, vector<1x4x256xf32>
    %4 = vector.shape_cast %3 : vector<1x4x256xf32> to vector<4x256xf32>
    %c0_3 = arith.constant 0 : index
    %c0_4 = arith.constant 0 : index
    %c0_5 = arith.constant 0 : index
    %5 = vector.load %arg4[%c0_3, %c0_4, %c0_5] : memref<1x1x256xi32, #tpu.memory_space<vmem>>, vector<1x1x256xi32>
    %6 = vector.shape_cast %5 : vector<1x1x256xi32> to vector<1x256xi32>
    %7 = tpu.iota {dimensions = array<i32: 0>} : vector<4x256xi32>
    %8 = vector.broadcast %6 : vector<1x256xi32> to vector<4x256xi32>
    %9 = arith.cmpi eq, %7, %8 : vector<4x256xi32>
    %cst = arith.constant 0.000000e+00 : f32
    %10 = vector.broadcast %cst : f32 to vector<4x256xf32>
    %11 = arith.select %9, %4, %10 : vector<4x256xi1>, vector<4x256xf32>
    %cst_6 = arith.constant dense<0.000000e+00> : vector<256xf32>
    %12 = vector.multi_reduction <add>, %11, %cst_6 [0] : vector<4x256xf32> to vector<256xf32>
    %13 = vector.shape_cast %12 : vector<256xf32> to vector<1x256xf32>
    %cst_7 = arith.constant dense<0xFF800000> : vector<256xf32>
    %14 = vector.multi_reduction <maximumf>, %4, %cst_7 [0] : vector<4x256xf32> to vector<256xf32>
    %15 = vector.shape_cast %14 : vector<256xf32> to vector<1x256xf32>
    %16 = vector.broadcast %15 : vector<1x256xf32> to vector<4x256xf32>
    %17 = arith.subf %4, %16 : vector<4x256xf32>
    %18 = math.exp %17 : vector<4x256xf32>
    %cst_8 = arith.constant dense<0.000000e+00> : vector<256xf32>
    %19 = vector.multi_reduction <add>, %18, %cst_8 [0] : vector<4x256xf32> to vector<256xf32>
    %20 = vector.shape_cast %19 : vector<256xf32> to vector<1x256xf32>
    %21 = math.log %20 : vector<1x256xf32>
    %22 = arith.addf %15, %21 : vector<1x256xf32>
    %23 = arith.subf %22, %13 : vector<1x256xf32>
    %cst_9 = arith.constant 0.000000e+00 : f32
    %24 = vector.broadcast %cst_9 : f32 to vector<1x256xf32>
    %25 = arith.subf %24, %23 : vector<1x256xf32>
    %26 = math.exp %25 : vector<1x256xf32>
    %cst_10 = arith.constant 1.000000e+00 : f32
    %27 = vector.broadcast %cst_10 : f32 to vector<1x256xf32>
    %28 = arith.subf %27, %26 : vector<1x256xf32>
    %29 = arith.mulf %28, %28 : vector<1x256xf32>
    %30 = arith.mulf %28, %29 : vector<1x256xf32>
    %31 = arith.mulf %30, %23 : vector<1x256xf32>
    %c0_11 = arith.constant 0 : index
    %c0_12 = arith.constant 0 : index
    %c0_13 = arith.constant 0 : index
    %c0_14 = arith.constant 0 : index
    %32 = vector.load %arg5[%c0_11, %c0_12, %c0_13, %c0_14] : memref<1x1x1x256xf32, #tpu.memory_space<vmem>>, vector<1x1x1x256xf32>
    %33 = vector.shape_cast %32 : vector<1x1x1x256xf32> to vector<1x256xf32>
    %34 = arith.addf %33, %31 : vector<1x256xf32>
    %c0_15 = arith.constant 0 : index
    %c0_16 = arith.constant 0 : index
    %c0_17 = arith.constant 0 : index
    %c0_18 = arith.constant 0 : index
    %35 = vector.load %arg5[%c0_15, %c0_16, %c0_17, %c0_18] : memref<1x1x1x256xf32, #tpu.memory_space<vmem>>, vector<1x1x1x256xf32>
    %36 = vector.shape_cast %35 : vector<1x1x1x256xf32> to vector<1x256xf32>
    %37 = vector.shape_cast %34 : vector<1x256xf32> to vector<1x1x1x256xf32>
    tpu.vector_store %arg5[%c0_15, %c0_16, %c0_17, %c0_18], %37 {strides = array<i32>} : memref<1x1x1x256xf32, #tpu.memory_space<vmem>>, vector<1x1x1x256xf32>,
    return
  }
  func.func @transform_0(%arg0: i32, %arg1: i32, %arg2: i32) -> (i32, i32, i32) {
    %c1_i32 = arith.constant 1 : i32
    %0 = arith.muli %arg1, %c1_i32 : i32
    %1 = arith.addi %0, %arg2 : i32
    %c0_i32 = arith.constant 0 : i32
    %c0_i32_0 = arith.constant 0 : i32
    return %arg0, %c0_i32, %1 : i32, i32, i32
  }
  func.func @transform_1(%arg0: i32, %arg1: i32, %arg2: i32) -> (i32, i32, i32) {
    %c1_i32 = arith.constant 1 : i32
    %0 = arith.muli %arg1, %c1_i32 : i32
    %1 = arith.addi %0, %arg2 : i32
    %c0_i32 = arith.constant 0 : i32
    %c0_i32_0 = arith.constant 0 : i32
    return %arg0, %c0_i32, %1 : i32, i32, i32
  }
  func.func @transform_2(%arg0: i32, %arg1: i32, %arg2: i32) -> (i32, i32, i32, i32) {
    %c0_i32 = arith.constant 0 : i32
    %c0_i32_0 = arith.constant 0 : i32
    %c0_i32_1 = arith.constant 0 : i32
    return %arg0, %arg1, %c0_i32, %c0_i32_0 : i32, i32, i32, i32
  }
}

</mosaic_0001>

<llo_original>
// kernel: tpu_custom_call.1
$region0: #{tpu_custom_call.1}
  #allocation0 [shape = 'u32[]', space=smem, size = 0x4, offset = 0x4, fixed_abs, tag = 'smem constant byte address 0x4 - core index']
  #allocation1 [shape = 'u32[72,128]{1,0:T(1,128)}', space=vmem, size = 0x9000, scoped, tag = 'internal scratch']
  %s0 = inlined_call_operand.hbm [shape: f32[2,4,256], index: 0, kind: input, shape index: {}]
  %s1 = inlined_call_operand.hbm [shape: s32[2,1,256], index: 1, kind: input, shape index: {}]
  %s2 = inlined_call_operand.hbm [shape: f32[2,1,1,256], index: 2, kind: output, shape index: {}]
  %s3 = sld [smem:[#allocation0]]
  $region53: #{tpu_custom_call.1} parent=0
    _
  %s5 = ssub.s32 1, %s3
  %s6 = scalar_select 0, %s5, %s3
  $region1: #{tpu_custom_call.1} parent=0
    #allocation2 [shape = 'u8[8192]{0}', space=vmem, size = 0x2000, scoped, tag = 'input window, operand 0']
    #allocation3 [shape = 's32[2]{0}', space=sflag, size = 0x8, scoped, tag = 'scoped memory for tpu_custom_call.1']
    #allocation4 [shape = 's32[2]{0}', space=sflag, size = 0x8, scoped, tag = 'scoped memory for tpu_custom_call.1']
    #allocation5 [shape = 'u8[2048]{0}', space=vmem, size = 0x800, scoped, tag = 'input window, operand 1']
    #allocation6 [shape = 's32[2]{0}', space=sflag, size = 0x8, scoped, tag = 'scoped memory for tpu_custom_call.1']
    #allocation7 [shape = 'u8[2048]{0}', space=vmem, size = 0x800, scoped, tag = 'output window, operand 0']
    %7 = vsyncpa [#allocation3], 0
    %s8 = scalar_lea.sflag [#allocation3], 1
    %9 = vsyncpa %s8, 0
    %10 = vsyncpa [#allocation6], 0
    %s11 = scalar_lea.sflag [#allocation6], 1
    %12 = vsyncpa %s11, 0
    %13 = vsyncpa [#allocation4], 0
    %s14 = scalar_lea.sflag [#allocation4], 1
    %15 = vsyncpa %s14, 0
    loop: start=0, step=1, limit=4
    $region2: #{tpu_custom_call.1} parent=1 // loop_pre_header
      _
    $region3: #{tpu_custom_call.1} parent=1 // loop_header
      %s17 = sphi 0, %s21
      %p18 = scmp.ge.s32.totalorder %s17, 4
      %s24 = sphi 0, %s43
      %s25 = sphi 0, %s39
      %s26 = sphi 0, %s35
      %s27 = sphi 0, %s24
      %s28 = sphi 0, %s25
      %s29 = sphi 0, %s26
      %s30 = sphi 0, %s27
      %s31 = sphi 0, %s28
      %s32 = sphi 0, %s29
      %s50 = sphi 0, %s52
      %s53 = sphi 0, %s50
      %s54 = sphi 0, %s53
      %s70 = sphi 0, %s54
      %s80 = sphi 0, %s82
      %s83 = sphi 0, %s80
      %s84 = sphi 0, %s83
      %s100 = sphi 0, %s84
      %s108 = sphi 0, %s110
      %s111 = sphi 0, %s108
      %s112 = sphi 0, %s111
      %s128 = sphi 0, %s112
    $region4: #{tpu_custom_call.1} parent=1 // loop_header_branch
      %20 = sbr.rel (%p18) target = $region8
    $region5: #{tpu_custom_call.1} parent=1 // loop_body
      %s22 = ssub.s32 %s17, 1
      %s23 = ssub.s32 %s17, 2
      %s33 = sadd.s32 1, %s26
      %p34 = scmp.ge.s32.totalorder %s33, 1
      %s35 = scalar_select %p34, 0, %s33
      %s36 = sadd.s32 1, %s25
      %s37 = scalar_select %p34, %s36, %s25
      %p38 = scmp.ge.s32.totalorder %s37, 1
      %s39 = scalar_select %p38, 0, %s37
      %s40 = sadd.s32 1, %s24
      %s41 = scalar_select %p38, %s40, %s24
      %p42 = scmp.ge.s32.totalorder %s41, 2
      %s43 = scalar_select %p42, 0, %s41
      %s44 = sadd.s32 %s25, %s26
      %s45 = sadd.s32 %s39, %s35
      %s46 = ssub.s32 %s24, %s43
      %s47 = ssub.s32 %s44, %s45
      %s48 = sor.u32 %s46, %s47
      %p49 = scmp.eq.s32.totalorder %s48, 0
      %s51 = sadd.s32 %s50, 1
      %s52 = scalar_select %p49, %s50, %s51
      %p55 = pneg %p49
      %p56 = scmp.eq.s32.totalorder %s17, 1
      %p57 = por %p55, %p56
      %p58 = scmp.ne.s32.totalorder %s50, %s53
      %p59 = scmp.eq.s32.totalorder %s17, 0
      %p60 = por %p58, %p59
      %p61 = scmp.ne.s32.totalorder %s50, %s53
      %p62 = scmp.eq.s32.totalorder %s22, 1
      %p63 = por %p61, %p62
      %p64 = scmp.ne.s32.totalorder %s53, %s54
      %p65 = scmp.eq.s32.totalorder %s22, 0
      %p66 = por %p64, %p65
      %p67 = scmp.ne.s32.totalorder %s53, %s54
      %p68 = scmp.eq.s32.totalorder %s23, 1
      %p69 = por %p67, %p68
      %p71 = scmp.ne.s32.totalorder %s54, %s70
      %p72 = scmp.eq.s32.totalorder %s23, 0
      %p73 = por %p71, %p72
      %s74 = sadd.s32 %s25, %s26
      %s75 = sadd.s32 %s39, %s35
      %s76 = ssub.s32 %s24, %s43
      %s77 = ssub.s32 %s74, %s75
      %s78 = sor.u32 %s76, %s77
      %p79 = scmp.eq.s32.totalorder %s78, 0
      %s81 = sadd.s32 %s80, 1
      %s82 = scalar_select %p79, %s80, %s81
      %p85 = pneg %p79
      %p86 = scmp.eq.s32.totalorder %s17, 1
      %p87 = por %p85, %p86
      %p88 = scmp.ne.s32.totalorder %s80, %s83
      %p89 = scmp.eq.s32.totalorder %s17, 0
      %p90 = por %p88, %p89
      %p91 = scmp.ne.s32.totalorder %s80, %s83
      %p92 = scmp.eq.s32.totalorder %s22, 1
      %p93 = por %p91, %p92
      %p94 = scmp.ne.s32.totalorder %s83, %s84
      %p95 = scmp.eq.s32.totalorder %s22, 0
      %p96 = por %p94, %p95
      %p97 = scmp.ne.s32.totalorder %s83, %s84
      %p98 = scmp.eq.s32.totalorder %s23, 1
      %p99 = por %p97, %p98
      %p101 = scmp.ne.s32.totalorder %s84, %s100
      %p102 = scmp.eq.s32.totalorder %s23, 0
      %p103 = por %p101, %p102
      %s104 = ssub.s32 %s24, %s43
      %s105 = ssub.s32 %s25, %s39
      %s106 = sor.u32 %s104, %s105
      %p107 = scmp.eq.s32.totalorder %s106, 0
      %s109 = sadd.s32 %s108, 1
      %s110 = scalar_select %p107, %s108, %s109
      %p113 = pneg %p107
      %p114 = scmp.eq.s32.totalorder %s17, 1
      %p115 = por %p113, %p114
      %p116 = scmp.ne.s32.totalorder %s108, %s111
      %p117 = scmp.eq.s32.totalorder %s17, 0
      %p118 = por %p116, %p117
      %p119 = scmp.ne.s32.totalorder %s108, %s111
      %p120 = scmp.eq.s32.totalorder %s22, 1
      %p121 = por %p119, %p120
      %p122 = scmp.ne.s32.totalorder %s111, %s112
      %p123 = scmp.eq.s32.totalorder %s22, 0
      %p124 = por %p122, %p123
      %p125 = scmp.ne.s32.totalorder %s111, %s112
      %p126 = scmp.eq.s32.totalorder %s23, 1
      %p127 = por %p125, %p126
      %p129 = scmp.ne.s32.totalorder %s112, %s128
      %p130 = scmp.eq.s32.totalorder %s23, 0
      %p131 = por %p129, %p130
      %p132 = scmp.le.s32.totalorder 1, %s17
      %p133 = scmp.lt.s32.totalorder %s17, 3
      %p134 = pnand %p132, %p133
      %p135 = pneg %p134
      // Predicated region
      $region9: #{tpu_custom_call.1} parent=5 // pred_check
        _
      $region10: #{tpu_custom_call.1} parent=5 // pred_check_branch
        %137 = sbr.rel (%p134) target = $region12
      $region11: #{tpu_custom_call.1} parent=5 // pred_region
        %s138 = ssub.s32 %s17, 1
      $region12: #{tpu_custom_call.1} parent=5 // pred_fallthru
        _
      %p139 = scmp.lt.s32.totalorder %s17, 2
      // Predicated region
      $region13: #{tpu_custom_call.1} parent=5 // pred_check
        %p140 = pneg %p139
      $region14: #{tpu_custom_call.1} parent=5 // pred_check_branch
        %142 = sbr.rel (%p140) target = $region16
      $region15: #{tpu_custom_call.1} parent=5 // pred_region
        // Predicated region
        $region17: #{tpu_custom_call.1} parent=15 // pred_check
          %p143 = pneg %p60
        $region18: #{tpu_custom_call.1} parent=15 // pred_check_branch
          %145 = sbr.rel (%p143) target = $region20
        $region19: #{tpu_custom_call.1} parent=15 // pred_region
          %s146 = sand.u32 %s50, 1
          %s147 = scalar_lea.sflag [#allocation3], %s146
          %s148 = sand.u32 %s50, 1
          %s149 = smul.addr %s148, 8
          %s150 = scalar_lea.vmem [#allocation2], %s149
          %s151 = sadd.s32 %s25, %s26
          %s152 = smul.u32 2, %s151
          %154 = vsyncadd %s147, 0
          %s155 = smul.addr %s24, 2
          %s156 = sadd.s32 %s152, %s155
          %s157 = smul.addr %s156, 4
          %s158 = scalar_lea.hbm %s0, %s157
          %s160 = sshll.u32 %s158, 4
          %s161 = int_to_ptr.hbm [resolvable:$true] %s160
          %s162 = sshll.u32 %s150, 4
          %s163 = int_to_ptr.vmem [resolvable:$true] %s162
          %165 = dma.hbm_to_vmem [thread:$0]  %s161, 128, %s163, %s147
        $region20: #{tpu_custom_call.1} parent=15 // pred_fallthru
          _
        // Predicated region
        $region21: #{tpu_custom_call.1} parent=15 // pred_check
          %p166 = pneg %p90
        $region22: #{tpu_custom_call.1} parent=15 // pred_check_branch
          %168 = sbr.rel (%p166) target = $region24
        $region23: #{tpu_custom_call.1} parent=15 // pred_region
          %s169 = sand.u32 %s80, 1
          %s170 = scalar_lea.sflag [#allocation6], %s169
          %s171 = sand.u32 %s80, 1
          %s172 = smul.addr %s171, 2
          %s173 = scalar_lea.vmem [#allocation5], %s172
          %s174 = sadd.s32 %s25, %s26
          %s175 = smul.u32 2, %s174
          %177 = vsyncadd %s170, 0
          %s178 = smul.addr %s24, 2
          %s179 = sadd.s32 %s175, %s178
          %s180 = scalar_lea.hbm %s1, %s179
          %s182 = sshll.u32 %s180, 4
          %s183 = int_to_ptr.hbm [resolvable:$true] %s182
          %s184 = sshll.u32 %s173, 4
          %s185 = int_to_ptr.vmem [resolvable:$true] %s184
          %187 = dma.hbm_to_vmem [thread:$0]  %s183, 32, %s185, %s170
        $region24: #{tpu_custom_call.1} parent=15 // pred_fallthru
          _
      $region16: #{tpu_custom_call.1} parent=5 // pred_fallthru
        _
      %p188 = scmp.le.s32.totalorder 1, %s17
      %p189 = scmp.lt.s32.totalorder %s17, 3
      %p190 = pnand %p188, %p189
      %p191 = pneg %p190
      // Predicated region
      $region25: #{tpu_custom_call.1} parent=5 // pred_check
        _
      $region26: #{tpu_custom_call.1} parent=5 // pred_check_branch
        %193 = sbr.rel (%p190) target = $region28
      $region27: #{tpu_custom_call.1} parent=5 // pred_region
        %s194 = ssub.s32 %s17, 1
        %s195 = sand.u32 %s53, 1
        %s196 = scalar_lea.sflag [#allocation3], %s195
        %s197 = sand.u32 %s53, 1
        %s198 = smul.addr %s197, 8
        %s199 = scalar_lea.vmem [#allocation2], %s198
        // Predicated region
        $region29: #{tpu_custom_call.1} parent=27 // pred_check
          %p200 = pneg %p66
        $region30: #{tpu_custom_call.1} parent=27 // pred_check_branch
          %202 = sbr.rel (%p200) target = $region32
        $region31: #{tpu_custom_call.1} parent=27 // pred_region
          %204 = dma.done %s196, 128
        $region32: #{tpu_custom_call.1} parent=27 // pred_fallthru
          _
        %s205 = sand.u32 %s83, 1
        %s206 = scalar_lea.sflag [#allocation6], %s205
        %s207 = sand.u32 %s83, 1
        %s208 = smul.addr %s207, 2
        %s209 = scalar_lea.vmem [#allocation5], %s208
        // Predicated region
        $region33: #{tpu_custom_call.1} parent=27 // pred_check
          %p210 = pneg %p96
        $region34: #{tpu_custom_call.1} parent=27 // pred_check_branch
          %212 = sbr.rel (%p210) target = $region36
        $region35: #{tpu_custom_call.1} parent=27 // pred_region
          %214 = dma.done %s206, 32
        $region36: #{tpu_custom_call.1} parent=27 // pred_fallthru
          _
        %s215 = sand.u32 %s53, 1
        %s216 = scalar_lea.sflag [#allocation3], %s215
        %s217 = sand.u32 %s53, 1
        %s218 = smul.addr %s217, 8
        %s219 = scalar_lea.vmem [#allocation2], %s218
        %p220 = pneg %p66
        %p221 = pneg %p63
        %s222 = sand.u32 %s83, 1
        %s223 = scalar_lea.sflag [#allocation6], %s222
        %s224 = sand.u32 %s83, 1
        %s225 = smul.addr %s224, 2
        %s226 = scalar_lea.vmem [#allocation5], %s225
        %p227 = pneg %p96
        %p228 = pneg %p93
        %p229 = pneg %p124
        %p230 = pneg %p121
        %s231 = sand.u32 %s111, 1
        %s232 = scalar_lea.sflag [#allocation4], %s231
        %s233 = sand.u32 %s111, 1
        %s234 = smul.addr %s233, 2
        %s235 = scalar_lea.vmem [#allocation7], %s234
        %s236 = sadd.s32 %s28, %s29
        %s237 = smul.u32 2, %s236
        %s238 = sadd.s32 %s28, %s29
        %s239 = smul.u32 2, %s238
        %p240 = scmp.eq.s32.totalorder %s29, 0
        // Predicated region
        $region37: #{tpu_custom_call.1} parent=27 // pred_check
          %p241 = pneg %p240
        $region38: #{tpu_custom_call.1} parent=27 // pred_check_branch
          %243 = sbr.rel (%p241) target = $region40
        $region39: #{tpu_custom_call.1} parent=27 // pred_region
          %v244 = vlaneseq
          %vm245 = vcmp.ge.s32.totalorder %v244, 0
          %vm246 = vcmp.lt.s32.totalorder %v244, 256
          %vm247 = vmand %vm245, %vm246
          %248 = vst.msk [vmem:[%s235] sm:$0x3] %vm247, 0.0
        $region40: #{tpu_custom_call.1} parent=27 // pred_fallthru
          _
        %v249 = vld [vmem:[%s199] sm:$0xff]
        %v250 = vld [vmem:[%s209] sm:$0x3]
        %v251 = vlaneseq
        %v252 = vshrl.u32 %v251, 7
        %v253 = vperm.slane %v250, 0
        %v254 = vperm.slane %v250, 1
        %vm255 = vcmp.eq.s32.totalorder %v252, %v253
        %vm256 = vcmp.eq.s32.totalorder %v252, %v254
        %258 = vst [vmem:[#allocation1] ss:$2 sm:$0xff] %v249
        %v259 = vld.sshfl [vmem:[#allocation1] sm:$0xff pattern:$0x75316420]
        %v260 = vld.sshfl [vmem:[#allocation1 + $0x8] sm:$0xff pattern:$0x75316420]
        %v263 = vsel %vm255, %v259, 0.0
        %v264 = vsel %vm256, %v260, 0.0
        %vm265 = vcmask 1043456
        %v266 = vsel %vm265, %v263, 0.0
        %v267 = vrot.slane %v266, 4
        %v268 = vadd.f32 %v266, %v267
        %v269 = vrot.slane %v268, 2
        %v270 = vadd.f32 %v268, %v269
        %v271 = vrot.slane %v270, 1
        %v272 = vadd.f32 %v270, %v271
        %v273 = vsel %vm265, %v264, 0.0
        %v274 = vrot.slane %v273, 4
        %v275 = vadd.f32 %v273, %v274
        %v276 = vrot.slane %v275, 2
        %v277 = vadd.f32 %v275, %v276
        %v278 = vrot.slane %v277, 1
        %v279 = vadd.f32 %v277, %v278
        %280 = vst [vmem:[#allocation1] ss:$2 sm:$0xff] %v249
        %v281 = vld.sshfl [vmem:[#allocation1] sm:$0xff pattern:$0x75316420]
        %v282 = vld.sshfl [vmem:[#allocation1 + $0x8] sm:$0xff pattern:$0x75316420]
        %v285 = vsel %vm265, %v281, -inf
        %v286 = vrot.slane %v285, 4
        %v287 = vmax.f32 %v285, %v286
        %v288 = vrot.slane %v287, 2
        %v289 = vmax.f32 %v287, %v288
        %v290 = vrot.slane %v289, 1
        %v291 = vmax.f32 %v289, %v290
        %v292 = vsel %vm265, %v282, -inf
        %v293 = vrot.slane %v292, 4
        %v294 = vmax.f32 %v292, %v293
        %v295 = vrot.slane %v294, 2
        %v296 = vmax.f32 %v294, %v295
        %v297 = vrot.slane %v296, 1
        %v298 = vmax.f32 %v296, %v297
        %v301 = vrot.slane %v298, 4
        %v302 = vsel %vm265, %v291, %v301
        %v304 = vsub.f32 %v249, %v302
        %v305 = vmul.f32 %v304, 1.442695
        %v306 = vpow.pop %v305
        %308 = vst [vmem:[#allocation1] ss:$2 sm:$0xff] %v306
        %v309 = vld.sshfl [vmem:[#allocation1] sm:$0xff pattern:$0x75316420]
        %v310 = vld.sshfl [vmem:[#allocation1 + $0x8] sm:$0xff pattern:$0x75316420]
        %v313 = vsel %vm265, %v309, 0.0
        %v314 = vrot.slane %v313, 4
        %v315 = vadd.f32 %v313, %v314
        %v316 = vrot.slane %v315, 2
        %v317 = vadd.f32 %v315, %v316
        %v318 = vrot.slane %v317, 1
        %v319 = vadd.f32 %v317, %v318
        %v320 = vsel %vm265, %v310, 0.0
        %v321 = vrot.slane %v320, 4
        %v322 = vadd.f32 %v320, %v321
        %v323 = vrot.slane %v322, 2
        %v324 = vadd.f32 %v322, %v323
        %v325 = vrot.slane %v324, 1
        %v326 = vadd.f32 %v324, %v325
        %v327 = vlog2.pop %v319
        %v328 = vmul.f32 %v327, 0.6931472
        %v329 = vlog2.pop %v326
        %v330 = vmul.f32 %v329, 0.6931472
        %v331 = vadd.f32 %v291, %v328
        %v332 = vadd.f32 %v298, %v330
        %v333 = vsub.f32 %v331, %v272
        %v334 = vsub.f32 %v332, %v279
        %v335 = vsub.f32 0.0, %v333
        %v336 = vsub.f32 0.0, %v334
        %v337 = vmul.f32 %v335, 1.442695
        %v338 = vpow.pop %v337
        %v339 = vmul.f32 %v336, 1.442695
        %v340 = vpow.pop %v339
        %v341 = vsub.f32 1.0, %v338
        %v342 = vsub.f32 1.0, %v340
        %v343 = vmul.f32 %v341, %v341
        %v344 = vmul.f32 %v342, %v342
        %v345 = vmul.f32 %v341, %v343
        %v346 = vmul.f32 %v342, %v344
        %v347 = vmul.f32 %v345, %v333
        %v348 = vmul.f32 %v346, %v334
        %v349 = vld [vmem:[%s235] sm:$0x3]
        %v352 = vrot.slane %v348, 7
        %vm353 = vcmask 1040384
        %v354 = vsel %vm353, %v347, %v352
        %v356 = vadd.f32 %v349, %v354
        %v357 = vlaneseq
        %vm358 = vcmp.ge.s32.totalorder %v357, 0
        %vm359 = vcmp.lt.s32.totalorder %v357, 256
        %vm360 = vmand %vm358, %vm359
        %361 = vst.msk [vmem:[%s235] sm:$0x3] %vm360, %v356
        %s362 = sand.u32 %s111, 1
        %s363 = scalar_lea.sflag [#allocation4], %s362
        %s364 = sand.u32 %s111, 1
        %s365 = smul.addr %s364, 2
        %s366 = scalar_lea.vmem [#allocation7], %s365
        // Predicated region
        $region41: #{tpu_custom_call.1} parent=27 // pred_check
          %p367 = pneg %p121
        $region42: #{tpu_custom_call.1} parent=27 // pred_check_branch
          %369 = sbr.rel (%p367) target = $region44
        $region43: #{tpu_custom_call.1} parent=27 // pred_region
          %371 = vsyncadd %s363, 0
          %s372 = smul.addr %s28, 2
          %s373 = smul.addr %s27, 2
          %s374 = sadd.s32 %s372, %s373
          %s375 = scalar_lea.hbm %s2, %s374
          %s377 = sshll.u32 %s366, 4
          %s378 = int_to_ptr.vmem [resolvable:$true] %s377
          %s379 = sshll.u32 %s375, 4
          %s380 = int_to_ptr.hbm [resolvable:$true] %s379
          %382 = dma.vmem_to_hbm [thread:$0]  %s378, 32, %s380, %s363
        $region44: #{tpu_custom_call.1} parent=27 // pred_fallthru
          _
      $region28: #{tpu_custom_call.1} parent=5 // pred_fallthru
        _
      %p383 = scmp.le.s32.totalorder 2, %s17
      // Predicated region
      $region45: #{tpu_custom_call.1} parent=5 // pred_check
        %p384 = pneg %p383
      $region46: #{tpu_custom_call.1} parent=5 // pred_check_branch
        %386 = sbr.rel (%p384) target = $region48
      $region47: #{tpu_custom_call.1} parent=5 // pred_region
        %s387 = ssub.s32 %s17, 2
        // Predicated region
        $region49: #{tpu_custom_call.1} parent=47 // pred_check
          %p388 = pneg %p127
        $region50: #{tpu_custom_call.1} parent=47 // pred_check_branch
          %390 = sbr.rel (%p388) target = $region52
        $region51: #{tpu_custom_call.1} parent=47 // pred_region
          %s391 = sand.u32 %s112, 1
          %s392 = scalar_lea.sflag [#allocation4], %s391
          %s393 = sand.u32 %s112, 1
          %s394 = smul.addr %s393, 2
          %s395 = scalar_lea.vmem [#allocation7], %s394
          %397 = dma.done %s392, 32
        $region52: #{tpu_custom_call.1} parent=47 // pred_fallthru
          _
      $region48: #{tpu_custom_call.1} parent=5 // pred_fallthru
        _
    $region6: #{tpu_custom_call.1} parent=1 // loop_footer
      %s21 = sadd.s32 1, %s17
    $region7: #{tpu_custom_call.1} parent=1 // loop_footer_branch
      %16 = sbr.rel target = $region3
    $region8: #{tpu_custom_call.1} parent=1 // loop_exit
      _
    %398 = vsyncpa [#allocation3], 1
    %s399 = scalar_lea.sflag [#allocation3], 1
    %400 = vsyncpa %s399, 1
    %401 = vsyncpa [#allocation6], 1
    %s402 = scalar_lea.sflag [#allocation6], 1
    %403 = vsyncpa %s402, 1
    %404 = vsyncpa [#allocation4], 1
    %s405 = scalar_lea.sflag [#allocation4], 1
    %406 = vsyncpa %s405, 1

</llo_original>
